<compile_context>
chip_gen: v7x
topology: tpu7x:2x2x1
jax: 0.10.0
libtpu: 0.0.40
codegen_flags: <defaults>
</compile_context>

<pallas_src>
import jax
import jax.numpy as jnp
from jax import lax
from jax.experimental import pallas as pl
from jax.experimental.pallas import tpu as pltpu


raw_text = ('We are about to study the idea of a computational process.\n'
            'Computational processes are abstract beings that inhabit computers.\n'
            'As they evolve, processes manipulate other abstract things called data.\n'
            'The evolution of a process is directed by a pattern of rules\n'
            'called a program. People create programs to direct processes. In effect,\n'
            'we conjure the spirits of the computer with our spells.').split()

vocab = sorted(set(raw_text))               # sorted for determinism
vocab_size = len(vocab)
word_to_idx = {word: idx for idx, word in enumerate(vocab)}

LANE = 128
SUBLANE = 8


def _round_up(x, m):
    return ((x + m - 1) // m) * m


def cbow_kernel(idx_ref, p_ref, b1_ref, w2t_ref, b2_ref, out_ref):
    """One batch tile: one-hot gather+sum, fused linear1+ReLU, linear2, log-softmax."""
    tb, ctx_size = idx_ref.shape
    vp = p_ref.shape[0]

    vocab_ids = lax.broadcasted_iota(jnp.int32, (1, vp), 1)          # (1, Vp)

    # counts[b, v] = multiplicity of word v in context b  -> (TB, Vp).
    # ctx_size is static, so this Python loop fully unrolls (no scf.for, no
    # loop-carried scalar deps).  Built directly in bf16 (counts <= ctx_size
    # are exact) and initialised from the c == 0 compare to drop one VPU pass.
    counts = (idx_ref[:, 0:1] == vocab_ids).astype(jnp.bfloat16)
    for c in range(1, ctx_size):
        counts = counts + (idx_ref[:, c:c + 1] == vocab_ids).astype(jnp.bfloat16)

    # sum of embeddings already projected through linear1:  counts @ (emb @ W1^T)
    # bf16 x bf16 MXU matmul, f32 accumulation, f32 bias add.
    h = jnp.dot(counts, p_ref[...], preferred_element_type=jnp.float32) + b1_ref[...]
    h = jnp.maximum(h, 0.0)                                          # ReLU

    logits = jnp.dot(h.astype(jnp.bfloat16), w2t_ref[...],
                     preferred_element_type=jnp.float32) + b2_ref[...]

    # log_softmax over the lane-padded row (pad columns carry a -1e30 bias ->
    # they never win the max and exp underflows to exactly 0).
    m = jnp.max(logits, axis=-1, keepdims=True)
    shifted = logits - m
    lse = jnp.log(jnp.sum(jnp.exp(shifted), axis=-1, keepdims=True))
    out_ref[...] = shifted - lse


def prepare_cbow_params(emb, w1, b1, w2, b2):
    """Hoisted, one-time parameter prep: fuse emb@W1^T, transpose W2, lane-pad, bf16 weights."""
    emb = jnp.asarray(emb, jnp.float32)
    w1 = jnp.asarray(w1, jnp.float32)
    b1 = jnp.asarray(b1, jnp.float32)
    w2 = jnp.asarray(w2, jnp.float32)
    b2 = jnp.asarray(b2, jnp.float32)

    V, _ = emb.shape
    H = w1.shape[0]
    Vp = _round_up(V, LANE)
    Hp = _round_up(H, LANE)

    p = emb @ w1.T                                                   # (V, H) fused projection
    # Weight matrices in bf16 (half the DMA / VMEM, native MXU dtype); biases
    # stay f32 and are added after the f32-accumulated matmuls.
    p_pad = jnp.zeros((Vp, Hp), jnp.float32).at[:V, :H].set(p).astype(jnp.bfloat16)
    b1_pad = jnp.zeros((1, Hp), jnp.float32).at[0, :H].set(b1)
    w2t_pad = jnp.zeros((Hp, Vp), jnp.float32).at[:H, :V].set(w2.T).astype(jnp.bfloat16)
    b2_pad = jnp.full((1, Vp), -1e30, jnp.float32).at[0, :V].set(b2)
    return p_pad, b1_pad, w2t_pad, b2_pad, V


def cbow_forward(indices, p_pad, b1_pad, w2t_pad, b2_pad, vocab_sz):
    """indices: (ctx,) or (B, ctx) int32 context-word ids -> (B, V) log-probs."""
    indices = jnp.asarray(indices, jnp.int32)
    if indices.ndim == 1:
        indices = indices[None, :]
    B, C = indices.shape
    Hp, Vp = w2t_pad.shape

    # Batch tile: sublane-aligned, capped at 256 rows, and split into >= 2
    # blocks whenever Bp >= 16 so the "parallel" grid axis can shard across
    # v7x's two TensorCores (no effect on single-TC v5e/v6e).
    Bp = _round_up(B, SUBLANE)
    if Bp >= 2 * SUBLANE:
        TB = min(256, _round_up(pl.cdiv(Bp, 2), SUBLANE))
    else:
        TB = Bp
    Bp = _round_up(Bp, TB)
    if Bp != B:
        # Padded batch rows reuse word id 0 -> garbage rows that are sliced off
        # below; wasted compute only, never incorrect output.
        indices = jnp.zeros((Bp, C), jnp.int32).at[:B].set(indices)

    cost = pl.CostEstimate(
        flops=4 * Bp * Vp * Hp,                       # two (Bp,Vp/Hp)x(.,Hp/Vp) matmuls
        transcendentals=Bp * Vp,                      # exp in log-softmax
        bytes_accessed=(4 * Bp * C                    # indices
                        + 2 * Vp * Hp + 2 * Hp * Vp   # bf16 P and W2^T
                        + 4 * Hp + 4 * Vp             # biases
                        + 4 * Bp * Vp),               # output
    )

    # NOTE: at realistic sizes (e.g. 50k vocab x 300 emb) this full-VMEM-
    # residency plan must be restructured: scalar-prefetch gather of C rows of
    # P per context instead of the O(B*V*H) one-hot contraction, a vocab grid
    # axis with (Hp, TV) blocks of W2^T (or memory_space=pl.ANY / single-
    # buffered weights) plus an online log-softmax, and an explicit
    # vmem_limit_bytes (v5e scoped default is only 16 MiB, v7x physical 64 MiB).
    out = pl.pallas_call(
        cbow_kernel,
        out_shape=jax.ShapeDtypeStruct((Bp, Vp), jnp.float32),
        grid=(Bp // TB,),
        in_specs=[
            pl.BlockSpec((TB, C), lambda i: (i, 0)),                 # context indices
            pl.BlockSpec((p_pad.shape[0], Hp), lambda i: (0, 0)),    # P = emb @ W1^T (bf16, padded)
            pl.BlockSpec((1, Hp), lambda i: (0, 0)),                 # b1 (f32)
            pl.BlockSpec((Hp, Vp), lambda i: (0, 0)),                # W2^T (bf16, lane padded)
            pl.BlockSpec((1, Vp), lambda i: (0, 0)),                 # b2 (f32, -1e30 in pad cols)
        ],
        out_specs=pl.BlockSpec((TB, Vp), lambda i: (i, 0)),
        compiler_params=pltpu.CompilerParams(
            dimension_semantics=("parallel",)),
        cost_estimate=cost,
    )(indices, p_pad, b1_pad, w2t_pad, b2_pad)

    return out[:B, :vocab_sz]


def cbow_reference(indices_row, emb, w1, b1, w2, b2):
    embeds = jnp.sum(emb[indices_row], axis=0).reshape(1, -1)
    h = jnp.maximum(embeds @ w1.T + b1, 0.0)
    logits = h @ w2.T + b2
    return jax.nn.log_softmax(logits, axis=-1)


if __name__ == "__main__":
    embedding_dim = 16
    hidden_dim = 128          # nn.Linear default in the module

    key = jax.random.PRNGKey(0)
    k_emb, k_w1, k_b1, k_w2, k_b2 = jax.random.split(key, 5)

    emb = jax.random.normal(k_emb, (vocab_size, embedding_dim), jnp.float32)
    w1 = jax.random.normal(k_w1, (hidden_dim, embedding_dim), jnp.float32) * 0.1
    b1 = jax.random.normal(k_b1, (hidden_dim,), jnp.float32) * 0.1
    w2 = jax.random.normal(k_w2, (vocab_size, hidden_dim), jnp.float32) * 0.1
    b2 = jax.random.normal(k_b2, (vocab_size,), jnp.float32) * 0.1

    params = prepare_cbow_params(emb, w1, b1, w2, b2)

    # Batch of 12 CBOW contexts (2 words left + 2 words right of each target);
    # 12 rows -> Bp=16, TB=8 -> 2 parallel batch blocks (exercises the multi-
    # block path plus padded batch rows).
    targets = list(range(2, 14))
    ctx_ids = [[word_to_idx[raw_text[t - 2]], word_to_idx[raw_text[t - 1]],
                word_to_idx[raw_text[t + 1]], word_to_idx[raw_text[t + 2]]]
               for t in targets]
    indices = jnp.array(ctx_ids, dtype=jnp.int32)                    # (12, 4)

    out = jax.block_until_ready(cbow_forward(indices, *params))
    assert out.shape == (len(targets), vocab_size)

    ref = jnp.concatenate(
        [cbow_reference(indices[b], emb, w1, b1, w2, b2) for b in range(len(targets))],
        axis=0)
    # bf16 weights -> tolerance loosened vs the f32 reference path.
    assert jnp.allclose(out, ref, atol=3e-2, rtol=3e-2), "batched mismatch vs JAX reference"

    # Single-context path: matches the original module's (1, V) output.
    out1 = jax.block_until_ready(cbow_forward(indices[0], *params))
    assert out1.shape == (1, vocab_size)
    assert jnp.allclose(out1, ref[0:1], atol=3e-2, rtol=3e-2), "single-context mismatch"

    print("KERNEL_OK")
</pallas_src>

<mosaic_0001>
module attributes {stable_mosaic.version = 11 : i64} {
  func.func @cbow_kernel(%arg0: i32, %arg1: memref<8x4xi32, #tpu.memory_space<vmem>>, %arg2: memref<128x128xbf16, #tpu.memory_space<vmem>>, %arg3: memref<1x128xf32, #tpu.memory_space<vmem>>, %arg4: memref<128x128xbf16, #tpu.memory_space<vmem>>, %arg5: memref<1x128xf32, #tpu.memory_space<vmem>>, %arg6: memref<8x128xf32, #tpu.memory_space<vmem>>) attributes {dimension_semantics = [#tpu.dimension_semantics<parallel>], iteration_bounds = array<i64: 2>, scalar_prefetch = 0 : i64, scratch_operands = 0 : i64, tpu.core_type = #tpu.core_type<tc>, window_params = [{transform_indices = @transform_0, window_bounds = array<i64: 8, 4>}, {pipeline_mode = #tpu.pipeline_mode<synchronous>, transform_indices = @transform_1, window_bounds = array<i64: 128, 128>}, {pipeline_mode = #tpu.pipeline_mode<synchronous>, transform_indices = @transform_2, window_bounds = array<i64: 1, 128>}, {pipeline_mode = #tpu.pipeline_mode<synchronous>, transform_indices = @transform_3, window_bounds = array<i64: 128, 128>}, {pipeline_mode = #tpu.pipeline_mode<synchronous>, transform_indices = @transform_4, window_bounds = array<i64: 1, 128>}, {transform_indices = @transform_5, window_bounds = array<i64: 8, 128>}]} {
    %0 = tpu.iota {dimensions = array<i32: 1>} : vector<1x128xi32>
    %c0 = arith.constant 0 : index
    %c0_0 = arith.constant 0 : index
    %1 = vector.load %arg1[%c0, %c0_0] : memref<8x4xi32, #tpu.memory_space<vmem>>, vector<8x1xi32>
    %2 = vector.broadcast %1 : vector<8x1xi32> to vector<8x128xi32>
    %3 = vector.broadcast %0 : vector<1x128xi32> to vector<8x128xi32>
    %4 = arith.cmpi eq, %2, %3 : vector<8x128xi32>
    %5 = arith.extui %4 : vector<8x128xi1> to vector<8x128xi32>
    %6 = arith.sitofp %5 : vector<8x128xi32> to vector<8x128xf32>
    %7 = arith.truncf %6 : vector<8x128xf32> to vector<8x128xbf16>
    %c0_1 = arith.constant 0 : index
    %c1 = arith.constant 1 : index
    %8 = vector.load %arg1[%c0_1, %c1] : memref<8x4xi32, #tpu.memory_space<vmem>>, vector<8x1xi32>
    %9 = vector.broadcast %8 : vector<8x1xi32> to vector<8x128xi32>
    %10 = vector.broadcast %0 : vector<1x128xi32> to vector<8x128xi32>
    %11 = arith.cmpi eq, %9, %10 : vector<8x128xi32>
    %12 = arith.extui %11 : vector<8x128xi1> to vector<8x128xi32>
    %13 = arith.sitofp %12 : vector<8x128xi32> to vector<8x128xf32>
    %14 = arith.truncf %13 : vector<8x128xf32> to vector<8x128xbf16>
    %15 = arith.addf %7, %14 : vector<8x128xbf16>
    %c0_2 = arith.constant 0 : index
    %c2 = arith.constant 2 : index
    %16 = vector.load %arg1[%c0_2, %c2] : memref<8x4xi32, #tpu.memory_space<vmem>>, vector<8x1xi32>
    %17 = vector.broadcast %16 : vector<8x1xi32> to vector<8x128xi32>
    %18 = vector.broadcast %0 : vector<1x128xi32> to vector<8x128xi32>
    %19 = arith.cmpi eq, %17, %18 : vector<8x128xi32>
    %20 = arith.extui %19 : vector<8x128xi1> to vector<8x128xi32>
    %21 = arith.sitofp %20 : vector<8x128xi32> to vector<8x128xf32>
    %22 = arith.truncf %21 : vector<8x128xf32> to vector<8x128xbf16>
    %23 = arith.addf %15, %22 : vector<8x128xbf16>
    %c0_3 = arith.constant 0 : index
    %c3 = arith.constant 3 : index
    %24 = vector.load %arg1[%c0_3, %c3] : memref<8x4xi32, #tpu.memory_space<vmem>>, vector<8x1xi32>
    %25 = vector.broadcast %24 : vector<8x1xi32> to vector<8x128xi32>
    %26 = vector.broadcast %0 : vector<1x128xi32> to vector<8x128xi32>
    %27 = arith.cmpi eq, %25, %26 : vector<8x128xi32>
    %28 = arith.extui %27 : vector<8x128xi1> to vector<8x128xi32>
    %29 = arith.sitofp %28 : vector<8x128xi32> to vector<8x128xf32>
    %30 = arith.truncf %29 : vector<8x128xf32> to vector<8x128xbf16>
    %31 = arith.addf %23, %30 : vector<8x128xbf16>
    %c0_4 = arith.constant 0 : index
    %c0_5 = arith.constant 0 : index
    %32 = vector.load %arg2[%c0_4, %c0_5] : memref<128x128xbf16, #tpu.memory_space<vmem>>, vector<128x128xbf16>
    %cst = arith.constant dense<0.000000e+00> : vector<8x128xf32>
    %33 = tpu.matmul %31, %32, %cst {dimension_numbers = #tpu.dot_dimension_numbers<[1], [0], [0], [1], [0, 0, 1, 1], [], []>} : vector<8x128xbf16>, vector<128x128xbf16>, vector<8x128xf32> -> vector<8x128xf32>
    %c0_6 = arith.constant 0 : index
    %c0_7 = arith.constant 0 : index
    %34 = vector.load %arg3[%c0_6, %c0_7] : memref<1x128xf32, #tpu.memory_space<vmem>>, vector<1x128xf32>
    %35 = vector.broadcast %34 : vector<1x128xf32> to vector<8x128xf32>
    %36 = arith.addf %33, %35 : vector<8x128xf32>
    %cst_8 = arith.constant 0.000000e+00 : f32
    %37 = vector.broadcast %cst_8 : f32 to vector<8x128xf32>
    %38 = arith.maximumf %36, %37 : vector<8x128xf32>
    %39 = arith.truncf %38 : vector<8x128xf32> to vector<8x128xbf16>
    %c0_9 = arith.constant 0 : index
    %c0_10 = arith.constant 0 : index
    %40 = vector.load %arg4[%c0_9, %c0_10] : memref<128x128xbf16, #tpu.memory_space<vmem>>, vector<128x128xbf16>
    %cst_11 = arith.constant dense<0.000000e+00> : vector<8x128xf32>
    %41 = tpu.matmul %39, %40, %cst_11 {dimension_numbers = #tpu.dot_dimension_numbers<[1], [0], [0], [1], [0, 0, 1, 1], [], []>} : vector<8x128xbf16>, vector<128x128xbf16>, vector<8x128xf32> -> vector<8x128xf32>
    %c0_12 = arith.constant 0 : index
    %c0_13 = arith.constant 0 : index
    %42 = vector.load %arg5[%c0_12, %c0_13] : memref<1x128xf32, #tpu.memory_space<vmem>>, vector<1x128xf32>
    %43 = vector.broadcast %42 : vector<1x128xf32> to vector<8x128xf32>
    %44 = arith.addf %41, %43 : vector<8x128xf32>
    %cst_14 = arith.constant dense<0xFF800000> : vector<8xf32>
    %45 = vector.multi_reduction <maximumf>, %44, %cst_14 [1] : vector<8x128xf32> to vector<8xf32>
    %46 = vector.shape_cast %45 : vector<8xf32> to vector<8x1xf32>
    %47 = vector.broadcast %46 : vector<8x1xf32> to vector<8x128xf32>
    %48 = arith.subf %44, %47 : vector<8x128xf32>
    %49 = math.exp %48 : vector<8x128xf32>
    %cst_15 = arith.constant dense<0.000000e+00> : vector<8xf32>
    %50 = vector.multi_reduction <add>, %49, %cst_15 [1] : vector<8x128xf32> to vector<8xf32>
    %51 = vector.shape_cast %50 : vector<8xf32> to vector<8x1xf32>
    %52 = math.log %51 : vector<8x1xf32>
    %53 = vector.broadcast %52 : vector<8x1xf32> to vector<8x128xf32>
    %54 = arith.subf %48, %53 : vector<8x128xf32>
    %c0_16 = arith.constant 0 : index
    %c0_17 = arith.constant 0 : index
    %55 = vector.load %arg6[%c0_16, %c0_17] : memref<8x128xf32, #tpu.memory_space<vmem>>, vector<8x128xf32>
    tpu.vector_store %arg6[%c0_16, %c0_17], %54 {strides = array<i32>} : memref<8x128xf32, #tpu.memory_space<vmem>>, vector<8x128xf32>,
    return
  }
  func.func @transform_0(%arg0: i32) -> (i32, i32) {
    %c0_i32 = arith.constant 0 : i32
    %c0_i32_0 = arith.constant 0 : i32
    return %arg0, %c0_i32 : i32, i32
  }
  func.func @transform_1(%arg0: i32) -> (i32, i32) {
    %c0_i32 = arith.constant 0 : i32
    %c0_i32_0 = arith.constant 0 : i32
    %c0_i32_1 = arith.constant 0 : i32
    return %c0_i32, %c0_i32_0 : i32, i32
  }
  func.func @transform_2(%arg0: i32) -> (i32, i32) {
    %c0_i32 = arith.constant 0 : i32
    %c0_i32_0 = arith.constant 0 : i32
    %c0_i32_1 = arith.constant 0 : i32
    return %c0_i32, %c0_i32_0 : i32, i32
  }
  func.func @transform_3(%arg0: i32) -> (i32, i32) {
    %c0_i32 = arith.constant 0 : i32
    %c0_i32_0 = arith.constant 0 : i32
    %c0_i32_1 = arith.constant 0 : i32
    return %c0_i32, %c0_i32_0 : i32, i32
  }
  func.func @transform_4(%arg0: i32) -> (i32, i32) {
    %c0_i32 = arith.constant 0 : i32
    %c0_i32_0 = arith.constant 0 : i32
    %c0_i32_1 = arith.constant 0 : i32
    return %c0_i32, %c0_i32_0 : i32, i32
  }
  func.func @transform_5(%arg0: i32) -> (i32, i32) {
    %c0_i32 = arith.constant 0 : i32
    %c0_i32_0 = arith.constant 0 : i32
    return %arg0, %c0_i32 : i32, i32
  }
}

</mosaic_0001>

<llo_original>
// kernel: tpu_custom_call.1
$region0: #{tpu_custom_call.1}
  #allocation0 [shape = 'u32[]', space=smem, size = 0x4, offset = 0x4, fixed_abs, tag = 'smem constant byte address 0x4 - core index']
  #allocation1 [shape = 'u32[144,128]{1,0:T(1,128)}', space=vmem, size = 0x12000, scoped, tag = 'internal scratch']
  %s0 = inlined_call_operand.vmem [shape: s32[16,4], index: 0, kind: input, shape index: {}]
  %s1 = inlined_call_operand.hbm [shape: bf16[128,128], index: 1, kind: input, shape index: {}]
  %s2 = inlined_call_operand.vmem [shape: f32[1,128], index: 2, kind: input, shape index: {}]
  %s3 = inlined_call_operand.hbm [shape: bf16[128,128], index: 3, kind: input, shape index: {}]
  %s4 = inlined_call_operand.vmem [shape: f32[1,128], index: 4, kind: input, shape index: {}]
  %s5 = inlined_call_operand.hbm [shape: f32[16,128], index: 5, kind: output, shape index: {}]
  %s6 = sld [smem:[#allocation0]]
  $region61: #{tpu_custom_call.1} parent=0
    _
  %s8 = ssub.s32 1, %s6
  %s9 = scalar_select 0, %s8, %s6
  $region1: #{tpu_custom_call.1} parent=0
    #allocation2 [shape = 'u8[32768]{0}', space=vmem, size = 0x8000, scoped, tag = 'input window, operand 1, single buffered']
    #allocation3 [shape = 's32[2]{0}', space=sflag, size = 0x8, scoped, tag = 'scoped memory for tpu_custom_call.1']
    #allocation4 [shape = 's32[2]{0}', space=sflag, size = 0x8, scoped, tag = 'scoped memory for tpu_custom_call.1']
    #allocation5 [shape = 'u8[32768]{0}', space=vmem, size = 0x8000, scoped, tag = 'input window, operand 3, single buffered']
    #allocation6 [shape = 's32[1]{0}', space=sflag, size = 0x4, scoped, tag = 'scoped memory for tpu_custom_call.1']
    #allocation7 [shape = 'u8[8192]{0}', space=vmem, size = 0x2000, scoped, tag = 'output window, operand 0']
    %10 = vsyncpa [#allocation3], 0
    %11 = vsyncpa [#allocation6], 0
    %12 = vsyncpa [#allocation4], 0
    %s13 = scalar_lea.sflag [#allocation4], 1
    %14 = vsyncpa %s13, 0
    loop: start=0, step=1, limit=4
    $region2: #{tpu_custom_call.1} parent=1 // loop_pre_header
      _
    $region3: #{tpu_custom_call.1} parent=1 // loop_header
      %s16 = sphi 0, %s20
      %p17 = scmp.ge.s32.totalorder %s16, 4
      %s26 = sphi 0, %s28
      %s29 = sphi 0, %s26
      %s30 = sphi 0, %s29
      %s46 = sphi 0, %s30
      %s50 = sphi 0, %s50
      %s52 = sphi 0, %s50
      %s53 = sphi 0, %s52
      %s67 = sphi 0, %s53
      %s71 = sphi 0, %s71
      %s73 = sphi 0, %s71
      %s74 = sphi 0, %s73
      %s88 = sphi 0, %s74
      %s92 = sphi 0, %s92
      %s94 = sphi 0, %s92
      %s95 = sphi 0, %s94
      %s109 = sphi 0, %s95
      %s113 = sphi 0, %s113
      %s115 = sphi 0, %s113
      %s116 = sphi 0, %s115
      %s130 = sphi 0, %s116
      %s136 = sphi 0, %s138
      %s139 = sphi 0, %s136
      %s140 = sphi 0, %s139
      %s156 = sphi 0, %s140
    $region4: #{tpu_custom_call.1} parent=1 // loop_header_branch
      %19 = sbr.rel (%p17) target = $region8
    $region5: #{tpu_custom_call.1} parent=1 // loop_body
      %s21 = ssub.s32 %s16, 1
      %s22 = ssub.s32 %s16, 2
      %s23 = sadd.s32 %s16, 1
      %s24 = ssub.s32 %s16, %s23
      %p25 = scmp.eq.s32.totalorder %s24, 0
      %s27 = sadd.s32 %s26, 1
      %s28 = scalar_select %p25, %s26, %s27
      %p31 = pneg %p25
      %p32 = scmp.eq.s32.totalorder %s16, 1
      %p33 = por %p31, %p32
      %p34 = scmp.ne.s32.totalorder %s26, %s29
      %p35 = scmp.eq.s32.totalorder %s16, 0
      %p36 = por %p34, %p35
      %p37 = scmp.ne.s32.totalorder %s26, %s29
      %p38 = scmp.eq.s32.totalorder %s21, 1
      %p39 = por %p37, %p38
      %p40 = scmp.ne.s32.totalorder %s29, %s30
      %p41 = scmp.eq.s32.totalorder %s21, 0
      %p42 = por %p40, %p41
      %p43 = scmp.ne.s32.totalorder %s29, %s30
      %p44 = scmp.eq.s32.totalorder %s22, 1
      %p45 = por %p43, %p44
      %p47 = scmp.ne.s32.totalorder %s30, %s46
      %p48 = scmp.eq.s32.totalorder %s22, 0
      %p49 = por %p47, %p48
      %s51 = sadd.s32 %s50, 1
      %p54 = scmp.eq.s32.totalorder %s16, 1
      %p55 = scmp.ne.s32.totalorder %s50, %s52
      %p56 = scmp.eq.s32.totalorder %s16, 0
      %p57 = por %p55, %p56
      %p58 = scmp.ne.s32.totalorder %s50, %s52
      %p59 = scmp.eq.s32.totalorder %s21, 1
      %p60 = por %p58, %p59
      %p61 = scmp.ne.s32.totalorder %s52, %s53
      %p62 = scmp.eq.s32.totalorder %s21, 0
      %p63 = por %p61, %p62
      %p64 = scmp.ne.s32.totalorder %s52, %s53
      %p65 = scmp.eq.s32.totalorder %s22, 1
      %p66 = por %p64, %p65
      %p68 = scmp.ne.s32.totalorder %s53, %s67
      %p69 = scmp.eq.s32.totalorder %s22, 0
      %p70 = por %p68, %p69
      %s72 = sadd.s32 %s71, 1
      %p75 = scmp.eq.s32.totalorder %s16, 1
      %p76 = scmp.ne.s32.totalorder %s71, %s73
      %p77 = scmp.eq.s32.totalorder %s16, 0
      %p78 = por %p76, %p77
      %p79 = scmp.ne.s32.totalorder %s71, %s73
      %p80 = scmp.eq.s32.totalorder %s21, 1
      %p81 = por %p79, %p80
      %p82 = scmp.ne.s32.totalorder %s73, %s74
      %p83 = scmp.eq.s32.totalorder %s21, 0
      %p84 = por %p82, %p83
      %p85 = scmp.ne.s32.totalorder %s73, %s74
      %p86 = scmp.eq.s32.totalorder %s22, 1
      %p87 = por %p85, %p86
      %p89 = scmp.ne.s32.totalorder %s74, %s88
      %p90 = scmp.eq.s32.totalorder %s22, 0
      %p91 = por %p89, %p90
      %s93 = sadd.s32 %s92, 1
      %p96 = scmp.eq.s32.totalorder %s16, 1
      %p97 = scmp.ne.s32.totalorder %s92, %s94
      %p98 = scmp.eq.s32.totalorder %s16, 0
      %p99 = por %p97, %p98
      %p100 = scmp.ne.s32.totalorder %s92, %s94
      %p101 = scmp.eq.s32.totalorder %s21, 1
      %p102 = por %p100, %p101
      %p103 = scmp.ne.s32.totalorder %s94, %s95
      %p104 = scmp.eq.s32.totalorder %s21, 0
      %p105 = por %p103, %p104
      %p106 = scmp.ne.s32.totalorder %s94, %s95
      %p107 = scmp.eq.s32.totalorder %s22, 1
      %p108 = por %p106, %p107
      %p110 = scmp.ne.s32.totalorder %s95, %s109
      %p111 = scmp.eq.s32.totalorder %s22, 0
      %p112 = por %p110, %p111
      %s114 = sadd.s32 %s113, 1
      %p117 = scmp.eq.s32.totalorder %s16, 1
      %p118 = scmp.ne.s32.totalorder %s113, %s115
      %p119 = scmp.eq.s32.totalorder %s16, 0
      %p120 = por %p118, %p119
      %p121 = scmp.ne.s32.totalorder %s113, %s115
      %p122 = scmp.eq.s32.totalorder %s21, 1
      %p123 = por %p121, %p122
      %p124 = scmp.ne.s32.totalorder %s115, %s116
      %p125 = scmp.eq.s32.totalorder %s21, 0
      %p126 = por %p124, %p125
      %p127 = scmp.ne.s32.totalorder %s115, %s116
      %p128 = scmp.eq.s32.totalorder %s22, 1
      %p129 = por %p127, %p128
      %p131 = scmp.ne.s32.totalorder %s116, %s130
      %p132 = scmp.eq.s32.totalorder %s22, 0
      %p133 = por %p131, %p132
      %s134 = ssub.s32 %s16, %s23
      %p135 = scmp.eq.s32.totalorder %s134, 0
      %s137 = sadd.s32 %s136, 1
      %s138 = scalar_select %p135, %s136, %s137
      %p141 = pneg %p135
      %p142 = scmp.eq.s32.totalorder %s16, 1
      %p143 = por %p141, %p142
      %p144 = scmp.ne.s32.totalorder %s136, %s139
      %p145 = scmp.eq.s32.totalorder %s16, 0
      %p146 = por %p144, %p145
      %p147 = scmp.ne.s32.totalorder %s136, %s139
      %p148 = scmp.eq.s32.totalorder %s21, 1
      %p149 = por %p147, %p148
      %p150 = scmp.ne.s32.totalorder %s139, %s140
      %p151 = scmp.eq.s32.totalorder %s21, 0
      %p152 = por %p150, %p151
      %p153 = scmp.ne.s32.totalorder %s139, %s140
      %p154 = scmp.eq.s32.totalorder %s22, 1
      %p155 = por %p153, %p154
      %p157 = scmp.ne.s32.totalorder %s140, %s156
      %p158 = scmp.eq.s32.totalorder %s22, 0
      %p159 = por %p157, %p158
      %p160 = scmp.le.s32.totalorder 1, %s16
      %p161 = scmp.lt.s32.totalorder %s16, 3
      %p162 = pnand %p160, %p161
      %p163 = pneg %p162
      // Predicated region
      $region9: #{tpu_custom_call.1} parent=5 // pred_check
        _
      $region10: #{tpu_custom_call.1} parent=5 // pred_check_branch
        %165 = sbr.rel (%p162) target = $region12
      $region11: #{tpu_custom_call.1} parent=5 // pred_region
        %s166 = ssub.s32 %s16, 1
        // Predicated region
        $region13: #{tpu_custom_call.1} parent=11 // pred_check
          %p167 = pneg %p63
        $region14: #{tpu_custom_call.1} parent=11 // pred_check_branch
          %169 = sbr.rel (%p167) target = $region16
        $region15: #{tpu_custom_call.1} parent=11 // pred_region
          %s171 = ssub.s32 1024, 1024
          %172 = vsyncadd [#allocation3], %s171
          %s173 = sshll.u32 [#allocation2], 4
          %s174 = int_to_ptr.vmem [resolvable:$true] %s173
          %179 = dma.hbm_to_vmem [thread:$0]  %s1, 1024, %s174, [#allocation3], 64, 64, 4
        $region16: #{tpu_custom_call.1} parent=11 // pred_fallthru
          _
        // Predicated region
        $region17: #{tpu_custom_call.1} parent=11 // pred_check
          %p180 = pneg %p84
        $region18: #{tpu_custom_call.1} parent=11 // pred_check_branch
          %182 = sbr.rel (%p180) target = $region20
        $region19: #{tpu_custom_call.1} parent=11 // pred_region
          _
        $region20: #{tpu_custom_call.1} parent=11 // pred_fallthru
          _
        // Predicated region
        $region21: #{tpu_custom_call.1} parent=11 // pred_check
          %p183 = pneg %p105
        $region22: #{tpu_custom_call.1} parent=11 // pred_check_branch
          %185 = sbr.rel (%p183) target = $region24
        $region23: #{tpu_custom_call.1} parent=11 // pred_region
          %s187 = ssub.s32 1024, 1024
          %188 = vsyncadd [#allocation6], %s187
          %s189 = sshll.u32 [#allocation5], 4
          %s190 = int_to_ptr.vmem [resolvable:$true] %s189
          %195 = dma.hbm_to_vmem [thread:$0]  %s3, 1024, %s190, [#allocation6], 64, 64, 4
        $region24: #{tpu_custom_call.1} parent=11 // pred_fallthru
          _
        // Predicated region
        $region25: #{tpu_custom_call.1} parent=11 // pred_check
          %p196 = pneg %p126
        $region26: #{tpu_custom_call.1} parent=11 // pred_check_branch
          %198 = sbr.rel (%p196) target = $region28
        $region27: #{tpu_custom_call.1} parent=11 // pred_region
          _
        $region28: #{tpu_custom_call.1} parent=11 // pred_fallthru
          _
      $region12: #{tpu_custom_call.1} parent=5 // pred_fallthru
        _
      %p199 = scmp.lt.s32.totalorder %s16, 2
      // Predicated region
      $region29: #{tpu_custom_call.1} parent=5 // pred_check
        %p200 = pneg %p199
      $region30: #{tpu_custom_call.1} parent=5 // pred_check_branch
        %202 = sbr.rel (%p200) target = $region32
      $region31: #{tpu_custom_call.1} parent=5 // pred_region
        // Predicated region
        $region33: #{tpu_custom_call.1} parent=31 // pred_check
          %p203 = pneg %p36
        $region34: #{tpu_custom_call.1} parent=31 // pred_check_branch
          %205 = sbr.rel (%p203) target = $region36
        $region35: #{tpu_custom_call.1} parent=31 // pred_region
          %p206 = scmp.lt.s32.totalorder %s16, 1
          %s207 = scalar_select %p206, %s16, 1
          %s208 = smul.addr %s207, 8
          %s209 = scalar_lea.vmem %s0, %s208
        $region36: #{tpu_custom_call.1} parent=31 // pred_fallthru
          _
      $region32: #{tpu_custom_call.1} parent=5 // pred_fallthru
        _
      %p210 = scmp.le.s32.totalorder 1, %s16
      %p211 = scmp.lt.s32.totalorder %s16, 3
      %p212 = pnand %p210, %p211
      %p213 = pneg %p212
      // Predicated region
      $region37: #{tpu_custom_call.1} parent=5 // pred_check
        _
      $region38: #{tpu_custom_call.1} parent=5 // pred_check_branch
        %215 = sbr.rel (%p212) target = $region40
      $region39: #{tpu_custom_call.1} parent=5 // pred_region
        %s216 = ssub.s32 %s16, 1
        // Predicated region
        $region41: #{tpu_custom_call.1} parent=39 // pred_check
          %p217 = pneg %p63
        $region42: #{tpu_custom_call.1} parent=39 // pred_check_branch
          %219 = sbr.rel (%p217) target = $region44
        $region43: #{tpu_custom_call.1} parent=39 // pred_region
          %220 = dma.done [#allocation3], 1024
        $region44: #{tpu_custom_call.1} parent=39 // pred_fallthru
          _
        // Predicated region
        $region45: #{tpu_custom_call.1} parent=39 // pred_check
          %p221 = pneg %p105
        $region46: #{tpu_custom_call.1} parent=39 // pred_check_branch
          %223 = sbr.rel (%p221) target = $region48
        $region47: #{tpu_custom_call.1} parent=39 // pred_region
          %224 = dma.done [#allocation6], 1024
        $region48: #{tpu_custom_call.1} parent=39 // pred_fallthru
          _
        %p225 = scmp.lt.s32.totalorder %s21, 1
        %s226 = scalar_select %p225, %s21, 1
        %s227 = smul.addr %s226, 8
        %s228 = scalar_lea.vmem %s0, %s227
        %p229 = pneg %p42
        %p230 = pneg %p39
        %p231 = pneg %p63
        %p232 = pneg %p60
        %p233 = pneg %p84
        %p234 = pneg %p81
        %p235 = pneg %p105
        %p236 = pneg %p102
        %p237 = pneg %p126
        %p238 = pneg %p123
        %p239 = pneg %p152
        %p240 = pneg %p149
        %s241 = sand.u32 %s139, 1
        %s242 = scalar_lea.sflag [#allocation4], %s241
        %s243 = sand.u32 %s139, 1
        %s244 = smul.addr %s243, 8
        %s245 = scalar_lea.vmem [#allocation7], %s244
        %p246 = scmp.lt.s32.totalorder %s21, 1
        %s247 = scalar_select %p246, %s21, 1
        %s248 = smul.addr %s247, 8
        %s249 = scalar_lea.vmem %s0, %s248
        %v251 = vlaneseq
        %v252 = vand.u32 %v251, 127
        %v253 = vld [vmem:[%s249] sm:$0xff]
        %254 = vset.pattern.permute.xlu0 0
        %255 = vperm.xlu0 %254, %v253
        %v256 = vpop.permute.xlu0 %255
        %vm257 = vcmp.eq.s32.totalorder %v256, %v252
        %v258 = vsel %vm257, 1, 0
        %v259 = vcvt.s32.f32 %v258
        %v260 = vpack.c.bf16 %v259, %v259
        %261 = vset.pattern.permute.xlu0 1
        %262 = vperm.xlu0 %261, %v253
        %v263 = vpop.permute.xlu0 %262
        %vm264 = vcmp.eq.s32.totalorder %v263, %v252
        %v265 = vsel %vm264, 1, 0
        %v266 = vcvt.s32.f32 %v265
        %v267 = vpack.c.bf16 %v266, %v266
        %v268 = vadd.bf16 %v260, %v267
        %269 = vset.pattern.permute.xlu0 2
        %270 = vperm.xlu0 %269, %v253
        %v271 = vpop.permute.xlu0 %270
        %vm272 = vcmp.eq.s32.totalorder %v271, %v252
        %v273 = vsel %vm272, 1, 0
        %v274 = vcvt.s32.f32 %v273
        %v275 = vpack.c.bf16 %v274, %v274
        %v276 = vadd.bf16 %v268, %v275
        %277 = vset.pattern.permute.xlu0 3
        %278 = vperm.xlu0 %277, %v253
        %v279 = vpop.permute.xlu0 %278
        %vm280 = vcmp.eq.s32.totalorder %v279, %v252
        %v281 = vsel %vm280, 1, 0
        %v282 = vcvt.s32.f32 %v281
        %v283 = vpack.c.bf16 %v282, %v282
        %v284 = vadd.bf16 %v276, %v283
        %v285 = vld [vmem:[#allocation2] sm:$0xf]
        %v286 = vld [vmem:[#allocation2 + $0x4] sm:$0xf]
        %v287 = vld [vmem:[#allocation2 + $0x8] sm:$0xf]
        %v288 = vld [vmem:[#allocation2 + $0xc] sm:$0xf]
        %v289 = vld [vmem:[#allocation2 + $0x10] sm:$0xf]
        %v290 = vld [vmem:[#allocation2 + $0x14] sm:$0xf]
        %v291 = vld [vmem:[#allocation2 + $0x18] sm:$0xf]
        %v292 = vld [vmem:[#allocation2 + $0x1c] sm:$0xf]
        %v293 = vld [vmem:[#allocation2 + $0x20] sm:$0xf]
        %v294 = vld [vmem:[#allocation2 + $0x24] sm:$0xf]
        %v295 = vld [vmem:[#allocation2 + $0x28] sm:$0xf]
        %v296 = vld [vmem:[#allocation2 + $0x2c] sm:$0xf]
        %v297 = vld [vmem:[#allocation2 + $0x30] sm:$0xf]
        %v298 = vld [vmem:[#allocation2 + $0x34] sm:$0xf]
        %v299 = vld [vmem:[#allocation2 + $0x38] sm:$0xf]
        %v300 = vld [vmem:[#allocation2 + $0x3c] sm:$0xf]
        %v301 = vld [vmem:[%s2] sm:$0x1]
        %v303 = vlaneseq
        %v304 = vshrl.u32 %v303, 7
        %v305 = vsub.s32 0, %v304
        %v306 = vrot.slane %v301, %v305
        %v324 = vunpack.c.l.b16 %v285
        %v325 = vunpack.c.l.b16 %v286
        %v326 = vunpack.c.l.b16 %v287
        %v327 = vunpack.c.l.b16 %v288
        %v328 = vunpack.c.l.b16 %v289
        %v329 = vunpack.c.l.b16 %v290
        %v330 = vunpack.c.l.b16 %v291
        %v331 = vunpack.c.l.b16 %v292
        %v332 = vunpack.c.l.b16 %v293
        %v333 = vunpack.c.l.b16 %v294
        %v334 = vunpack.c.l.b16 %v295
        %v335 = vunpack.c.l.b16 %v296
        %v336 = vunpack.c.l.b16 %v297
        %v337 = vunpack.c.l.b16 %v298
        %v338 = vunpack.c.l.b16 %v299
        %v339 = vunpack.c.l.b16 %v300
        %v340 = vpack.c.b16 %v325, %v324
        %v341 = vpack.c.b16 %v327, %v326
        %v342 = vpack.c.b16 %v329, %v328
        %v343 = vpack.c.b16 %v331, %v330
        %v344 = vpack.c.b16 %v333, %v332
        %v345 = vpack.c.b16 %v335, %v334
        %v346 = vpack.c.b16 %v337, %v336
        %v347 = vpack.c.b16 %v339, %v338
        %356 = vmatprep.subr.bf16.mxu0 0
        %357 = vmatpush1.bf16.msra.mxu0 %v340
        %358 = vmatprep.subr.bf16.mxu0 0
        %359 = vmatpush1.bf16.msra.mxu0 %v341
        %360 = vmatprep.subr.bf16.mxu0 0
        %361 = vmatpush1.bf16.msra.mxu0 %v342
        %362 = vmatprep.subr.bf16.mxu0 0
        %363 = vmatpush1.bf16.msra.mxu0 %v343
        %364 = vmatprep.subr.bf16.mxu0 0
        %365 = vmatpush1.bf16.msra.mxu0 %v344
        %366 = vmatprep.subr.bf16.mxu0 0
        %367 = vmatpush1.bf16.msra.mxu0 %v345
        %368 = vmatprep.subr.bf16.mxu0 0
        %369 = vmatpush1.bf16.msra.mxu0 %v346
        %370 = vmatprep.subr.bf16.mxu0 0
        %371 = vmatpush1.bf16.msra.mxu0 %v347
        %372 = vmatprep.subr.bf16.mxu0 0
        %373 = vmatpush1.bf16.msra.mxu0 0
        %374 = vmatprep.subr.bf16.mxu0 0
        %375 = vmatpush1.bf16.msra.mxu0 0
        %376 = vmatprep.subr.bf16.mxu0 0
        %377 = vmatpush1.bf16.msra.mxu0 0
        %378 = vmatprep.subr.bf16.mxu0 0
        %379 = vmatpush1.bf16.msra.mxu0 0
        %380 = vmatprep.subr.bf16.mxu0 0
        %381 = vmatpush1.bf16.msra.mxu0 0
        %382 = vmatprep.subr.bf16.mxu0 0
        %383 = vmatpush1.bf16.msra.mxu0 0
        %384 = vmatprep.subr.bf16.mxu0 0
        %385 = vmatpush1.bf16.msra.mxu0 0
        %386 = vmatprep.subr.bf16.mxu0 0
        %387 = vmatpush1.bf16.msra.mxu0 0
        %388 = vmatprep.mubr.bf16.mxu0 0
        %389 = vmatmul.mubr.bf16.gmra.mrb[0].mxu0 %v284
        %v390 = vpop.f32.mrb[0].mxu0
        %v391 = vadd.f32 %v306, %v390
        %v392 = vpop.f32.mrb[0].mxu0
        %v393 = vpop.f32.mrb[0].mxu0
        %v394 = vpop.f32.mrb[0].mxu0
        %395 = vdwg.mxu0
        %v396 = vmax.f32 %v391, 0.0
        %v397 = vpack.c.bf16 %v396, %v396
        %v398 = vld [vmem:[#allocation5] sm:$0xf]
        %v399 = vld [vmem:[#allocation5 + $0x4] sm:$0xf]
        %v400 = vld [vmem:[#allocation5 + $0x8] sm:$0xf]
        %v401 = vld [vmem:[#allocation5 + $0xc] sm:$0xf]
        %v402 = vld [vmem:[#allocation5 + $0x10] sm:$0xf]
        %v403 = vld [vmem:[#allocation5 + $0x14] sm:$0xf]
        %v404 = vld [vmem:[#allocation5 + $0x18] sm:$0xf]
        %v405 = vld [vmem:[#allocation5 + $0x1c] sm:$0xf]
        %v406 = vld [vmem:[#allocation5 + $0x20] sm:$0xf]
        %v407 = vld [vmem:[#allocation5 + $0x24] sm:$0xf]
        %v408 = vld [vmem:[#allocation5 + $0x28] sm:$0xf]
        %v409 = vld [vmem:[#allocation5 + $0x2c] sm:$0xf]
        %v410 = vld [vmem:[#allocation5 + $0x30] sm:$0xf]
        %v411 = vld [vmem:[#allocation5 + $0x34] sm:$0xf]
        %v412 = vld [vmem:[#allocation5 + $0x38] sm:$0xf]
        %v413 = vld [vmem:[#allocation5 + $0x3c] sm:$0xf]
        %v414 = vld [vmem:[%s4] sm:$0x1]
        %v416 = vlaneseq
        %v417 = vshrl.u32 %v416, 7
        %v418 = vsub.s32 0, %v417
        %v419 = vrot.slane %v414, %v418
        %v437 = vunpack.c.l.b16 %v398
        %v438 = vunpack.c.l.b16 %v399
        %v439 = vunpack.c.l.b16 %v400
        %v440 = vunpack.c.l.b16 %v401
        %v441 = vunpack.c.l.b16 %v402
        %v442 = vunpack.c.l.b16 %v403
        %v443 = vunpack.c.l.b16 %v404
        %v444 = vunpack.c.l.b16 %v405
        %v445 = vunpack.c.l.b16 %v406
        %v446 = vunpack.c.l.b16 %v407
        %v447 = vunpack.c.l.b16 %v408
        %v448 = vunpack.c.l.b16 %v409
        %v449 = vunpack.c.l.b16 %v410
        %v450 = vunpack.c.l.b16 %v411
        %v451 = vunpack.c.l.b16 %v412
        %v452 = vunpack.c.l.b16 %v413
        %v453 = vpack.c.b16 %v438, %v437
        %v454 = vpack.c.b16 %v440, %v439
        %v455 = vpack.c.b16 %v442, %v441
        %v456 = vpack.c.b16 %v444, %v443
        %v457 = vpack.c.b16 %v446, %v445
        %v458 = vpack.c.b16 %v448, %v447
        %v459 = vpack.c.b16 %v450, %v449
        %v460 = vpack.c.b16 %v452, %v451
        %469 = vmatprep.subr.bf16.mxu0 0
        %470 = vmatpush1.bf16.msra.mxu0 %v453
        %471 = vmatprep.subr.bf16.mxu0 0
        %472 = vmatpush1.bf16.msra.mxu0 %v454
        %473 = vmatprep.subr.bf16.mxu0 0
        %474 = vmatpush1.bf16.msra.mxu0 %v455
        %475 = vmatprep.subr.bf16.mxu0 0
        %476 = vmatpush1.bf16.msra.mxu0 %v456
        %477 = vmatprep.subr.bf16.mxu0 0
        %478 = vmatpush1.bf16.msra.mxu0 %v457
        %479 = vmatprep.subr.bf16.mxu0 0
        %480 = vmatpush1.bf16.msra.mxu0 %v458
        %481 = vmatprep.subr.bf16.mxu0 0
        %482 = vmatpush1.bf16.msra.mxu0 %v459
        %483 = vmatprep.subr.bf16.mxu0 0
        %484 = vmatpush1.bf16.msra.mxu0 %v460
        %485 = vmatprep.subr.bf16.mxu0 0
        %486 = vmatpush1.bf16.msra.mxu0 0
        %487 = vmatprep.subr.bf16.mxu0 0
        %488 = vmatpush1.bf16.msra.mxu0 0
        %489 = vmatprep.subr.bf16.mxu0 0
        %490 = vmatpush1.bf16.msra.mxu0 0
        %491 = vmatprep.subr.bf16.mxu0 0
        %492 = vmatpush1.bf16.msra.mxu0 0
        %493 = vmatprep.subr.bf16.mxu0 0
        %494 = vmatpush1.bf16.msra.mxu0 0
        %495 = vmatprep.subr.bf16.mxu0 0
        %496 = vmatpush1.bf16.msra.mxu0 0
        %497 = vmatprep.subr.bf16.mxu0 0
        %498 = vmatpush1.bf16.msra.mxu0 0
        %499 = vmatprep.subr.bf16.mxu0 0
        %500 = vmatpush1.bf16.msra.mxu0 0
        %501 = vmatprep.mubr.bf16.mxu0 0
        %502 = vmatmul.mubr.bf16.gmra.mrb[0].mxu0 %v397
        %v503 = vpop.f32.mrb[0].mxu0
        %v504 = vadd.f32 %v419, %v503
        %v505 = vpop.f32.mrb[0].mxu0
        %v506 = vpop.f32.mrb[0].mxu0
        %v507 = vpop.f32.mrb[0].mxu0
        %508 = vdwg.mxu0
        %509 = vmax.xlane.f32.xlu0 %v504
        %v510 = vpop.xlane.xlu0 %509
        %v511 = vsub.f32 %v504, %v510
        %v512 = vmul.f32 %v511, 1.442695
        %v513 = vpow.pop %v512
        %514 = vadd.xlane.f32.xlu0 %v513
        %v515 = vpop.xlane.xlu0 %514
        %v516 = vlog2.pop %v515
        %v517 = vmul.f32 %v516, 0.6931472
        %v518 = vsub.f32 %v511, %v517
        %519 = vst [vmem:[%s245] sm:$0xff] %v518
        %s520 = sand.u32 %s139, 1
        %s521 = scalar_lea.sflag [#allocation4], %s520
        %s522 = sand.u32 %s139, 1
        %s523 = smul.addr %s522, 8
        %s524 = scalar_lea.vmem [#allocation7], %s523
        // Predicated region
        $region49: #{tpu_custom_call.1} parent=39 // pred_check
          %p525 = pneg %p149
        $region50: #{tpu_custom_call.1} parent=39 // pred_check_branch
          %527 = sbr.rel (%p525) target = $region52
        $region51: #{tpu_custom_call.1} parent=39 // pred_region
          %s529 = ssub.s32 128, 128
          %530 = vsyncadd %s521, %s529
          %s531 = smul.addr %s21, 128
          %s532 = scalar_lea.hbm %s5, %s531
          %s534 = sshll.u32 %s524, 4
          %s535 = int_to_ptr.vmem [resolvable:$true] %s534
          %537 = dma.vmem_to_hbm [thread:$0]  %s535, 128, %s532, %s521
        $region52: #{tpu_custom_call.1} parent=39 // pred_fallthru
          _
      $region40: #{tpu_custom_call.1} parent=5 // pred_fallthru
        _
      %p538 = scmp.le.s32.totalorder 2, %s16
      // Predicated region
      $region53: #{tpu_custom_call.1} parent=5 // pred_check
        %p539 = pneg %p538
      $region54: #{tpu_custom_call.1} parent=5 // pred_check_branch
        %541 = sbr.rel (%p539) target = $region56
      $region55: #{tpu_custom_call.1} parent=5 // pred_region
        %s542 = ssub.s32 %s16, 2
        // Predicated region
        $region57: #{tpu_custom_call.1} parent=55 // pred_check
          %p543 = pneg %p155
        $region58: #{tpu_custom_call.1} parent=55 // pred_check_branch
          %545 = sbr.rel (%p543) target = $region60
        $region59: #{tpu_custom_call.1} parent=55 // pred_region
          %s546 = sand.u32 %s140, 1
          %s547 = scalar_lea.sflag [#allocation4], %s546
          %s548 = sand.u32 %s140, 1
          %s549 = smul.addr %s548, 8
          %s550 = scalar_lea.vmem [#allocation7], %s549
          %551 = dma.done %s547, 128
        $region60: #{tpu_custom_call.1} parent=55 // pred_fallthru
          _
      $region56: #{tpu_custom_call.1} parent=5 // pred_fallthru
        _
    $region6: #{tpu_custom_call.1} parent=1 // loop_footer
      %s20 = sadd.s32 1, %s16
    $region7: #{tpu_custom_call.1} parent=1 // loop_footer_branch
      %15 = sbr.rel target = $region3
    $region8: #{tpu_custom_call.1} parent=1 // loop_exit
      _
    %552 = vsyncpa [#allocation3], 1
    %s553 = scalar_lea.sflag [#allocation3], 1
    %554 = vsyncpa %s553, 1
    %555 = vsyncpa [#allocation6], 1
    %556 = vsyncpa [#allocation4], 1
    %s557 = scalar_lea.sflag [#allocation4], 1
    %558 = vsyncpa %s557, 1

</llo_original>
